<compile_context>
chip_gen: v5e
topology: v5e:2x2
jax: 0.10.0
libtpu: 0.0.40
codegen_flags: <defaults>
</compile_context>

<pallas_src>
import functools

import jax
import jax.numpy as jnp
from jax.experimental import pallas as pl
from jax.experimental.pallas import tpu as pltpu


def _gelu_exact(x):
    # nn.GELU() default = exact erf-based GELU.
    return 0.5 * x * (1.0 + jax.lax.erf(x * (2.0 ** -0.5)))


def _mlp_kernel(x_ref, w1_ref, b1_ref, w2_ref, b2_ref, o_ref):
    # x_ref: (TM, C_in); w1_ref: (C_in, H); b1_ref: (1, H)
    # w2_ref: (H, C_out); b2_ref: (1, C_out); o_ref: (TM, C_out)
    x = x_ref[...]

    # fc1 + bias (f32 accumulation on the MXU)
    h = jnp.dot(x, w1_ref[...], preferred_element_type=jnp.float32)
    h = h + b1_ref[...]

    # exact GELU (matches torch.nn.GELU default)
    h = _gelu_exact(h)

    # dropout(p=0.0) -> identity

    # fc2 + bias
    out = jnp.dot(h.astype(x.dtype), w2_ref[...],
                  preferred_element_type=jnp.float32)
    out = out + b2_ref[...]

    # dropout(p=0.0) -> identity
    o_ref[...] = out.astype(o_ref.dtype)


def _pick_block_rows(total_rows, max_rows=512):
    """Largest row-tile that (a) divides total_rows, (b) is a multiple of 8
    (or the full extent), (c) leaves >=2 grid steps when possible (megacore),
    (d) stays <= max_rows."""
    if total_rows <= 8:
        return total_rows
    candidates = [d for d in range(8, min(total_rows, max_rows) + 1, 8)
                  if total_rows % d == 0]
    if not candidates:
        return total_rows
    multi_step = [d for d in candidates if total_rows // d >= 2]
    return max(multi_step) if multi_step else max(candidates)


def mlp_pallas(x, w1, b1, w2, b2, *, block_rows=None):
    """x: (B, N, C_in) f32; w1: (C_in, H); b1: (H,); w2: (H, C_out); b2: (C_out,).

    Weights are stored pre-transposed relative to nn.Linear.weight so the
    kernel does plain row-major matmuls (y = x @ W + b).
    """
    B, N, C_in = x.shape
    H = w1.shape[1]
    C_out = w2.shape[1]

    R = B * N
    x2 = x.reshape(R, C_in)                  # lane-dense row slab (free reshape)
    b1_2 = b1.reshape(1, H)
    b2_2 = b2.reshape(1, C_out)

    tm = block_rows if block_rows is not None else _pick_block_rows(R)
    assert R % tm == 0, "row tile must divide total rows"
    grid = (R // tm,)

    out2 = pl.pallas_call(
        _mlp_kernel,
        out_shape=jax.ShapeDtypeStruct((R, C_out), x.dtype),
        grid_spec=pltpu.PrefetchScalarGridSpec(
            num_scalar_prefetch=0,
            grid=grid,
            in_specs=[
                pl.BlockSpec((tm, C_in), lambda i: (i, 0)),
                pl.BlockSpec((C_in, H), lambda i: (0, 0)),
                pl.BlockSpec((1, H), lambda i: (0, 0)),
                pl.BlockSpec((H, C_out), lambda i: (0, 0)),
                pl.BlockSpec((1, C_out), lambda i: (0, 0)),
            ],
            out_specs=pl.BlockSpec((tm, C_out), lambda i: (i, 0)),
        ),
        compiler_params=pltpu.CompilerParams(
            dimension_semantics=("parallel",)),
    )(x2, w1, b1_2, w2, b2_2)

    return out2.reshape(B, N, C_out)


def mlp_ref(x, w1, b1, w2, b2):
    """Plain-JAX reference mirroring the PyTorch forward (drop=0.0)."""
    h = x @ w1 + b1
    h = _gelu_exact(h)
    return h @ w2 + b2


if __name__ == "__main__":
    # Small but lane-dense shapes consistent with a transformer token MLP:
    # (B, N, C_in) tokens, hidden = 2 * C_in.
    B, N, C_in = 2, 16, 128
    H = 256
    C_out = C_in

    key = jax.random.PRNGKey(0)
    kx, kw1, kb1, kw2, kb2 = jax.random.split(key, 5)

    x = jax.random.normal(kx, (B, N, C_in), dtype=jnp.float32)
    # nn.Linear(in, hidden): weight (H, C_in) -> stored transposed (C_in, H).
    w1 = jax.random.normal(kw1, (C_in, H), dtype=jnp.float32) * 0.05
    b1 = jax.random.normal(kb1, (H,), dtype=jnp.float32) * 0.01
    # nn.Linear(hidden, out): weight (C_out, H) -> stored transposed (H, C_out).
    w2 = jax.random.normal(kw2, (H, C_out), dtype=jnp.float32) * 0.05
    b2 = jax.random.normal(kb2, (C_out,), dtype=jnp.float32) * 0.01

    out = mlp_pallas(x, w1, b1, w2, b2)
    out = jax.block_until_ready(out)

    ref = mlp_ref(x, w1, b1, w2, b2)
    assert out.shape == (B, N, C_out)
    assert jnp.allclose(out, ref, atol=1e-4, rtol=1e-4), "mismatch vs reference"

    print("KERNEL_OK")
</pallas_src>

<mosaic_0001>
module attributes {stable_mosaic.version = 11 : i64} {
  func.func @_mlp_kernel(%arg0: i32, %arg1: memref<16x128xf32, #tpu.memory_space<vmem>>, %arg2: memref<128x256xf32, #tpu.memory_space<vmem>>, %arg3: memref<1x256xf32, #tpu.memory_space<vmem>>, %arg4: memref<256x128xf32, #tpu.memory_space<vmem>>, %arg5: memref<1x128xf32, #tpu.memory_space<vmem>>, %arg6: memref<16x128xf32, #tpu.memory_space<vmem>>) attributes {dimension_semantics = [#tpu.dimension_semantics<parallel>], iteration_bounds = array<i64: 2>, scalar_prefetch = 0 : i64, scratch_operands = 0 : i64, tpu.core_type = #tpu.core_type<tc>, window_params = [{transform_indices = @transform_0, window_bounds = array<i64: 16, 128>}, {pipeline_mode = #tpu.pipeline_mode<synchronous>, transform_indices = @transform_1, window_bounds = array<i64: 128, 256>}, {pipeline_mode = #tpu.pipeline_mode<synchronous>, transform_indices = @transform_2, window_bounds = array<i64: 1, 256>}, {pipeline_mode = #tpu.pipeline_mode<synchronous>, transform_indices = @transform_3, window_bounds = array<i64: 256, 128>}, {pipeline_mode = #tpu.pipeline_mode<synchronous>, transform_indices = @transform_4, window_bounds = array<i64: 1, 128>}, {transform_indices = @transform_5, window_bounds = array<i64: 16, 128>}]} {
    %c0 = arith.constant 0 : index
    %c0_0 = arith.constant 0 : index
    %0 = vector.load %arg1[%c0, %c0_0] : memref<16x128xf32, #tpu.memory_space<vmem>>, vector<16x128xf32>
    %c0_1 = arith.constant 0 : index
    %c0_2 = arith.constant 0 : index
    %1 = vector.load %arg2[%c0_1, %c0_2] : memref<128x256xf32, #tpu.memory_space<vmem>>, vector<128x256xf32>
    %cst = arith.constant dense<0.000000e+00> : vector<16x256xf32>
    %2 = tpu.matmul %0, %1, %cst {dimension_numbers = #tpu.dot_dimension_numbers<[1], [0], [0], [1], [0, 0, 1, 1], [], []>} : vector<16x128xf32>, vector<128x256xf32>, vector<16x256xf32> -> vector<16x256xf32>
    %c0_3 = arith.constant 0 : index
    %c0_4 = arith.constant 0 : index
    %3 = vector.load %arg3[%c0_3, %c0_4] : memref<1x256xf32, #tpu.memory_space<vmem>>, vector<1x256xf32>
    %4 = vector.broadcast %3 : vector<1x256xf32> to vector<16x256xf32>
    %5 = arith.addf %2, %4 : vector<16x256xf32>
    %cst_5 = arith.constant 5.000000e-01 : f32
    %6 = vector.broadcast %cst_5 : f32 to vector<16x256xf32>
    %7 = arith.mulf %6, %5 : vector<16x256xf32>
    %cst_6 = arith.constant 0.707106769 : f32
    %8 = vector.broadcast %cst_6 : f32 to vector<16x256xf32>
    %9 = arith.mulf %5, %8 : vector<16x256xf32>
    %10 = math.erf %9 : vector<16x256xf32>
    %cst_7 = arith.constant 1.000000e+00 : f32
    %11 = vector.broadcast %cst_7 : f32 to vector<16x256xf32>
    %12 = arith.addf %11, %10 : vector<16x256xf32>
    %13 = arith.mulf %7, %12 : vector<16x256xf32>
    %c0_8 = arith.constant 0 : index
    %c0_9 = arith.constant 0 : index
    %14 = vector.load %arg4[%c0_8, %c0_9] : memref<256x128xf32, #tpu.memory_space<vmem>>, vector<256x128xf32>
    %cst_10 = arith.constant dense<0.000000e+00> : vector<16x128xf32>
    %15 = tpu.matmul %13, %14, %cst_10 {dimension_numbers = #tpu.dot_dimension_numbers<[1], [0], [0], [1], [0, 0, 1, 1], [], []>} : vector<16x256xf32>, vector<256x128xf32>, vector<16x128xf32> -> vector<16x128xf32>
    %c0_11 = arith.constant 0 : index
    %c0_12 = arith.constant 0 : index
    %16 = vector.load %arg5[%c0_11, %c0_12] : memref<1x128xf32, #tpu.memory_space<vmem>>, vector<1x128xf32>
    %17 = vector.broadcast %16 : vector<1x128xf32> to vector<16x128xf32>
    %18 = arith.addf %15, %17 : vector<16x128xf32>
    %c0_13 = arith.constant 0 : index
    %c0_14 = arith.constant 0 : index
    %19 = vector.load %arg6[%c0_13, %c0_14] : memref<16x128xf32, #tpu.memory_space<vmem>>, vector<16x128xf32>
    tpu.vector_store %arg6[%c0_13, %c0_14], %18 {strides = array<i32>} : memref<16x128xf32, #tpu.memory_space<vmem>>, vector<16x128xf32>,
    return
  }
  func.func @transform_0(%arg0: i32) -> (i32, i32) {
    %c0_i32 = arith.constant 0 : i32
    %c0_i32_0 = arith.constant 0 : i32
    return %arg0, %c0_i32 : i32, i32
  }
  func.func @transform_1(%arg0: i32) -> (i32, i32) {
    %c0_i32 = arith.constant 0 : i32
    %c0_i32_0 = arith.constant 0 : i32
    %c0_i32_1 = arith.constant 0 : i32
    return %c0_i32, %c0_i32_0 : i32, i32
  }
  func.func @transform_2(%arg0: i32) -> (i32, i32) {
    %c0_i32 = arith.constant 0 : i32
    %c0_i32_0 = arith.constant 0 : i32
    %c0_i32_1 = arith.constant 0 : i32
    return %c0_i32, %c0_i32_0 : i32, i32
  }
  func.func @transform_3(%arg0: i32) -> (i32, i32) {
    %c0_i32 = arith.constant 0 : i32
    %c0_i32_0 = arith.constant 0 : i32
    %c0_i32_1 = arith.constant 0 : i32
    return %c0_i32, %c0_i32_0 : i32, i32
  }
  func.func @transform_4(%arg0: i32) -> (i32, i32) {
    %c0_i32 = arith.constant 0 : i32
    %c0_i32_0 = arith.constant 0 : i32
    %c0_i32_1 = arith.constant 0 : i32
    return %c0_i32, %c0_i32_0 : i32, i32
  }
  func.func @transform_5(%arg0: i32) -> (i32, i32) {
    %c0_i32 = arith.constant 0 : i32
    %c0_i32_0 = arith.constant 0 : i32
    return %arg0, %c0_i32 : i32, i32
  }
}

</mosaic_0001>

<llo_original>
// kernel: tpu_custom_call.1
$region0: #{tpu_custom_call.1}
  #allocation0 [shape = 'u32[]', space=smem, size = 0x4, offset = 0x4, fixed_abs, tag = 'smem constant byte address 0x4 - core index']
  #allocation1 [shape = 'u32[72,128]{1,0:T(1,128)}', space=vmem, size = 0x9000, scoped, tag = 'internal scratch']
  %s0 = inlined_call_operand.hbm [shape: f32[32,128], index: 0, kind: input, shape index: {}]
  %s1 = inlined_call_operand.hbm [shape: f32[128,256], index: 1, kind: input, shape index: {}]
  %s2 = inlined_call_operand.hbm [shape: f32[1,256], index: 2, kind: input, shape index: {}]
  %s3 = inlined_call_operand.hbm [shape: f32[256,128], index: 3, kind: input, shape index: {}]
  %s4 = inlined_call_operand.vmem [shape: f32[1,128], index: 4, kind: input, shape index: {}]
  %s5 = inlined_call_operand.hbm [shape: f32[32,128], index: 5, kind: output, shape index: {}]
  %s6 = sld [smem:[#allocation0]]
  $region69: #{tpu_custom_call.1} parent=0
    _
  %s8 = ssub.s32 1, %s6
  %s9 = scalar_select 0, %s8, %s6
  $region1: #{tpu_custom_call.1} parent=0
    #allocation2 [shape = 'u8[16384]{0}', space=vmem, size = 0x4000, scoped, tag = 'input window, operand 0']
    #allocation3 [shape = 's32[2]{0}', space=sflag, size = 0x8, scoped, tag = 'scoped memory for tpu_custom_call.1']
    #allocation4 [shape = 's32[2]{0}', space=sflag, size = 0x8, scoped, tag = 'scoped memory for tpu_custom_call.1']
    #allocation5 [shape = 'u8[131072]{0}', space=vmem, size = 0x20000, scoped, tag = 'input window, operand 1, single buffered']
    #allocation6 [shape = 's32[1]{0}', space=sflag, size = 0x4, scoped, tag = 'scoped memory for tpu_custom_call.1']
    #allocation7 [shape = 'u8[1024]{0}', space=vmem, size = 0x400, scoped, tag = 'input window, operand 2, single buffered']
    #allocation8 [shape = 'u8[131072]{0}', space=vmem, size = 0x20000, scoped, tag = 'input window, operand 3, single buffered']
    #allocation9 [shape = 's32[1]{0}', space=sflag, size = 0x4, scoped, tag = 'scoped memory for tpu_custom_call.1']
    #allocation10 [shape = 'u8[16384]{0}', space=vmem, size = 0x4000, scoped, tag = 'output window, operand 0']
    %10 = vsyncpa [#allocation3], 0
    %s11 = scalar_lea.sflag [#allocation3], 1
    %12 = vsyncpa %s11, 0
    %13 = vsyncpa [#allocation6], 0
    %14 = vsyncpa [#allocation9], 0
    %15 = vsyncpa [#allocation4], 0
    %s16 = scalar_lea.sflag [#allocation4], 1
    %17 = vsyncpa %s16, 0
    loop: start=0, step=1, limit=4
    $region2: #{tpu_custom_call.1} parent=1 // loop_pre_header
      _
    $region3: #{tpu_custom_call.1} parent=1 // loop_header
      %s19 = sphi 0, %s23
      %p20 = scmp.ge.s32.totalorder %s19, 4
      %s29 = sphi 0, %s31
      %s32 = sphi 0, %s29
      %s33 = sphi 0, %s32
      %s49 = sphi 0, %s33
      %s53 = sphi 0, %s53
      %s55 = sphi 0, %s53
      %s56 = sphi 0, %s55
      %s70 = sphi 0, %s56
      %s74 = sphi 0, %s74
      %s76 = sphi 0, %s74
      %s77 = sphi 0, %s76
      %s91 = sphi 0, %s77
      %s95 = sphi 0, %s95
      %s97 = sphi 0, %s95
      %s98 = sphi 0, %s97
      %s112 = sphi 0, %s98
      %s116 = sphi 0, %s116
      %s118 = sphi 0, %s116
      %s119 = sphi 0, %s118
      %s133 = sphi 0, %s119
      %s139 = sphi 0, %s141
      %s142 = sphi 0, %s139
      %s143 = sphi 0, %s142
      %s159 = sphi 0, %s143
    $region4: #{tpu_custom_call.1} parent=1 // loop_header_branch
      %22 = sbr.rel (%p20) target = $region8
    $region5: #{tpu_custom_call.1} parent=1 // loop_body
      %s24 = ssub.s32 %s19, 1
      %s25 = ssub.s32 %s19, 2
      %s26 = sadd.s32 %s19, 1
      %s27 = ssub.s32 %s19, %s26
      %p28 = scmp.eq.s32.totalorder %s27, 0
      %s30 = sadd.s32 %s29, 1
      %s31 = scalar_select %p28, %s29, %s30
      %p34 = pneg %p28
      %p35 = scmp.eq.s32.totalorder %s19, 1
      %p36 = por %p34, %p35
      %p37 = scmp.ne.s32.totalorder %s29, %s32
      %p38 = scmp.eq.s32.totalorder %s19, 0
      %p39 = por %p37, %p38
      %p40 = scmp.ne.s32.totalorder %s29, %s32
      %p41 = scmp.eq.s32.totalorder %s24, 1
      %p42 = por %p40, %p41
      %p43 = scmp.ne.s32.totalorder %s32, %s33
      %p44 = scmp.eq.s32.totalorder %s24, 0
      %p45 = por %p43, %p44
      %p46 = scmp.ne.s32.totalorder %s32, %s33
      %p47 = scmp.eq.s32.totalorder %s25, 1
      %p48 = por %p46, %p47
      %p50 = scmp.ne.s32.totalorder %s33, %s49
      %p51 = scmp.eq.s32.totalorder %s25, 0
      %p52 = por %p50, %p51
      %s54 = sadd.s32 %s53, 1
      %p57 = scmp.eq.s32.totalorder %s19, 1
      %p58 = scmp.ne.s32.totalorder %s53, %s55
      %p59 = scmp.eq.s32.totalorder %s19, 0
      %p60 = por %p58, %p59
      %p61 = scmp.ne.s32.totalorder %s53, %s55
      %p62 = scmp.eq.s32.totalorder %s24, 1
      %p63 = por %p61, %p62
      %p64 = scmp.ne.s32.totalorder %s55, %s56
      %p65 = scmp.eq.s32.totalorder %s24, 0
      %p66 = por %p64, %p65
      %p67 = scmp.ne.s32.totalorder %s55, %s56
      %p68 = scmp.eq.s32.totalorder %s25, 1
      %p69 = por %p67, %p68
      %p71 = scmp.ne.s32.totalorder %s56, %s70
      %p72 = scmp.eq.s32.totalorder %s25, 0
      %p73 = por %p71, %p72
      %s75 = sadd.s32 %s74, 1
      %p78 = scmp.eq.s32.totalorder %s19, 1
      %p79 = scmp.ne.s32.totalorder %s74, %s76
      %p80 = scmp.eq.s32.totalorder %s19, 0
      %p81 = por %p79, %p80
      %p82 = scmp.ne.s32.totalorder %s74, %s76
      %p83 = scmp.eq.s32.totalorder %s24, 1
      %p84 = por %p82, %p83
      %p85 = scmp.ne.s32.totalorder %s76, %s77
      %p86 = scmp.eq.s32.totalorder %s24, 0
      %p87 = por %p85, %p86
      %p88 = scmp.ne.s32.totalorder %s76, %s77
      %p89 = scmp.eq.s32.totalorder %s25, 1
      %p90 = por %p88, %p89
      %p92 = scmp.ne.s32.totalorder %s77, %s91
      %p93 = scmp.eq.s32.totalorder %s25, 0
      %p94 = por %p92, %p93
      %s96 = sadd.s32 %s95, 1
      %p99 = scmp.eq.s32.totalorder %s19, 1
      %p100 = scmp.ne.s32.totalorder %s95, %s97
      %p101 = scmp.eq.s32.totalorder %s19, 0
      %p102 = por %p100, %p101
      %p103 = scmp.ne.s32.totalorder %s95, %s97
      %p104 = scmp.eq.s32.totalorder %s24, 1
      %p105 = por %p103, %p104
      %p106 = scmp.ne.s32.totalorder %s97, %s98
      %p107 = scmp.eq.s32.totalorder %s24, 0
      %p108 = por %p106, %p107
      %p109 = scmp.ne.s32.totalorder %s97, %s98
      %p110 = scmp.eq.s32.totalorder %s25, 1
      %p111 = por %p109, %p110
      %p113 = scmp.ne.s32.totalorder %s98, %s112
      %p114 = scmp.eq.s32.totalorder %s25, 0
      %p115 = por %p113, %p114
      %s117 = sadd.s32 %s116, 1
      %p120 = scmp.eq.s32.totalorder %s19, 1
      %p121 = scmp.ne.s32.totalorder %s116, %s118
      %p122 = scmp.eq.s32.totalorder %s19, 0
      %p123 = por %p121, %p122
      %p124 = scmp.ne.s32.totalorder %s116, %s118
      %p125 = scmp.eq.s32.totalorder %s24, 1
      %p126 = por %p124, %p125
      %p127 = scmp.ne.s32.totalorder %s118, %s119
      %p128 = scmp.eq.s32.totalorder %s24, 0
      %p129 = por %p127, %p128
      %p130 = scmp.ne.s32.totalorder %s118, %s119
      %p131 = scmp.eq.s32.totalorder %s25, 1
      %p132 = por %p130, %p131
      %p134 = scmp.ne.s32.totalorder %s119, %s133
      %p135 = scmp.eq.s32.totalorder %s25, 0
      %p136 = por %p134, %p135
      %s137 = ssub.s32 %s19, %s26
      %p138 = scmp.eq.s32.totalorder %s137, 0
      %s140 = sadd.s32 %s139, 1
      %s141 = scalar_select %p138, %s139, %s140
      %p144 = pneg %p138
      %p145 = scmp.eq.s32.totalorder %s19, 1
      %p146 = por %p144, %p145
      %p147 = scmp.ne.s32.totalorder %s139, %s142
      %p148 = scmp.eq.s32.totalorder %s19, 0
      %p149 = por %p147, %p148
      %p150 = scmp.ne.s32.totalorder %s139, %s142
      %p151 = scmp.eq.s32.totalorder %s24, 1
      %p152 = por %p150, %p151
      %p153 = scmp.ne.s32.totalorder %s142, %s143
      %p154 = scmp.eq.s32.totalorder %s24, 0
      %p155 = por %p153, %p154
      %p156 = scmp.ne.s32.totalorder %s142, %s143
      %p157 = scmp.eq.s32.totalorder %s25, 1
      %p158 = por %p156, %p157
      %p160 = scmp.ne.s32.totalorder %s143, %s159
      %p161 = scmp.eq.s32.totalorder %s25, 0
      %p162 = por %p160, %p161
      %p163 = scmp.le.s32.totalorder 1, %s19
      %p164 = scmp.lt.s32.totalorder %s19, 3
      %p165 = pnand %p163, %p164
      %p166 = pneg %p165
      // Predicated region
      $region9: #{tpu_custom_call.1} parent=5 // pred_check
        _
      $region10: #{tpu_custom_call.1} parent=5 // pred_check_branch
        %168 = sbr.rel (%p165) target = $region12
      $region11: #{tpu_custom_call.1} parent=5 // pred_region
        %s169 = ssub.s32 %s19, 1
        // Predicated region
        $region13: #{tpu_custom_call.1} parent=11 // pred_check
          %p170 = pneg %p66
        $region14: #{tpu_custom_call.1} parent=11 // pred_check_branch
          %172 = sbr.rel (%p170) target = $region16
        $region15: #{tpu_custom_call.1} parent=11 // pred_region
          %174 = vsyncadd [#allocation6], 0
          %s175 = sshll.u32 %s1, 4
          %s176 = int_to_ptr.hbm [resolvable:$true] %s175
          %s177 = sshll.u32 [#allocation5], 4
          %s178 = int_to_ptr.vmem [resolvable:$true] %s177
          %183 = dma.hbm_to_vmem [thread:$0]  %s176, 4096, %s178, [#allocation6], 256, 256, 16
        $region16: #{tpu_custom_call.1} parent=11 // pred_fallthru
          _
        // Predicated region
        $region17: #{tpu_custom_call.1} parent=11 // pred_check
          %p184 = pneg %p87
        $region18: #{tpu_custom_call.1} parent=11 // pred_check_branch
          %186 = sbr.rel (%p184) target = $region20
        $region19: #{tpu_custom_call.1} parent=11 // pred_region
          %188 = vsyncadd [#allocation6], 0
          %s190 = sshll.u32 %s2, 4
          %s191 = int_to_ptr.hbm [resolvable:$true] %s190
          %s192 = sshll.u32 [#allocation7], 4
          %s193 = int_to_ptr.vmem [resolvable:$true] %s192
          %195 = dma.hbm_to_vmem [thread:$0]  %s191, 32, %s193, [#allocation6]
        $region20: #{tpu_custom_call.1} parent=11 // pred_fallthru
          _
        // Predicated region
        $region21: #{tpu_custom_call.1} parent=11 // pred_check
          %p196 = pneg %p108
        $region22: #{tpu_custom_call.1} parent=11 // pred_check_branch
          %198 = sbr.rel (%p196) target = $region24
        $region23: #{tpu_custom_call.1} parent=11 // pred_region
          %200 = vsyncadd [#allocation9], 0
          %s201 = sshll.u32 %s3, 4
          %s202 = int_to_ptr.hbm [resolvable:$true] %s201
          %s203 = sshll.u32 [#allocation8], 4
          %s204 = int_to_ptr.vmem [resolvable:$true] %s203
          %209 = dma.hbm_to_vmem [thread:$0]  %s202, 4096, %s204, [#allocation9], 128, 128, 8
        $region24: #{tpu_custom_call.1} parent=11 // pred_fallthru
          _
        // Predicated region
        $region25: #{tpu_custom_call.1} parent=11 // pred_check
          %p210 = pneg %p129
        $region26: #{tpu_custom_call.1} parent=11 // pred_check_branch
          %212 = sbr.rel (%p210) target = $region28
        $region27: #{tpu_custom_call.1} parent=11 // pred_region
          _
        $region28: #{tpu_custom_call.1} parent=11 // pred_fallthru
          _
      $region12: #{tpu_custom_call.1} parent=5 // pred_fallthru
        _
      %p213 = scmp.lt.s32.totalorder %s19, 2
      // Predicated region
      $region29: #{tpu_custom_call.1} parent=5 // pred_check
        %p214 = pneg %p213
      $region30: #{tpu_custom_call.1} parent=5 // pred_check_branch
        %216 = sbr.rel (%p214) target = $region32
      $region31: #{tpu_custom_call.1} parent=5 // pred_region
        // Predicated region
        $region33: #{tpu_custom_call.1} parent=31 // pred_check
          %p217 = pneg %p39
        $region34: #{tpu_custom_call.1} parent=31 // pred_check_branch
          %219 = sbr.rel (%p217) target = $region36
        $region35: #{tpu_custom_call.1} parent=31 // pred_region
          %s220 = sand.u32 %s29, 1
          %s221 = scalar_lea.sflag [#allocation3], %s220
          %s222 = sand.u32 %s29, 1
          %s223 = smul.addr %s222, 16
          %s224 = scalar_lea.vmem [#allocation2], %s223
          %s225 = smul.u32 2, %s19
          %227 = vsyncadd %s221, 0
          %s228 = smul.addr %s225, 8
          %s229 = scalar_lea.hbm %s0, %s228
          %s230 = sshll.u32 %s229, 4
          %s231 = int_to_ptr.hbm [resolvable:$true] %s230
          %s232 = sshll.u32 %s224, 4
          %s233 = int_to_ptr.vmem [resolvable:$true] %s232
          %238 = dma.hbm_to_vmem [thread:$0]  %s231, 256, %s233, %s221, 128, 128, 8
        $region36: #{tpu_custom_call.1} parent=31 // pred_fallthru
          _
      $region32: #{tpu_custom_call.1} parent=5 // pred_fallthru
        _
      %p239 = scmp.le.s32.totalorder 1, %s19
      %p240 = scmp.lt.s32.totalorder %s19, 3
      %p241 = pnand %p239, %p240
      %p242 = pneg %p241
      // Predicated region
      $region37: #{tpu_custom_call.1} parent=5 // pred_check
        _
      $region38: #{tpu_custom_call.1} parent=5 // pred_check_branch
        %244 = sbr.rel (%p241) target = $region40
      $region39: #{tpu_custom_call.1} parent=5 // pred_region
        %s245 = ssub.s32 %s19, 1
        %s246 = sand.u32 %s32, 1
        %s247 = scalar_lea.sflag [#allocation3], %s246
        %s248 = sand.u32 %s32, 1
        %s249 = smul.addr %s248, 16
        %s250 = scalar_lea.vmem [#allocation2], %s249
        // Predicated region
        $region41: #{tpu_custom_call.1} parent=39 // pred_check
          %p251 = pneg %p45
        $region42: #{tpu_custom_call.1} parent=39 // pred_check_branch
          %253 = sbr.rel (%p251) target = $region44
        $region43: #{tpu_custom_call.1} parent=39 // pred_region
          %255 = dma.done %s247, 256
        $region44: #{tpu_custom_call.1} parent=39 // pred_fallthru
          _
        // Predicated region
        $region45: #{tpu_custom_call.1} parent=39 // pred_check
          %p256 = pneg %p66
        $region46: #{tpu_custom_call.1} parent=39 // pred_check_branch
          %258 = sbr.rel (%p256) target = $region48
        $region47: #{tpu_custom_call.1} parent=39 // pred_region
          %260 = dma.done [#allocation6], 4096
        $region48: #{tpu_custom_call.1} parent=39 // pred_fallthru
          _
        // Predicated region
        $region49: #{tpu_custom_call.1} parent=39 // pred_check
          %p261 = pneg %p87
        $region50: #{tpu_custom_call.1} parent=39 // pred_check_branch
          %263 = sbr.rel (%p261) target = $region52
        $region51: #{tpu_custom_call.1} parent=39 // pred_region
          %265 = dma.done [#allocation6], 32
        $region52: #{tpu_custom_call.1} parent=39 // pred_fallthru
          _
        // Predicated region
        $region53: #{tpu_custom_call.1} parent=39 // pred_check
          %p266 = pneg %p108
        $region54: #{tpu_custom_call.1} parent=39 // pred_check_branch
          %268 = sbr.rel (%p266) target = $region56
        $region55: #{tpu_custom_call.1} parent=39 // pred_region
          %270 = dma.done [#allocation9], 4096
        $region56: #{tpu_custom_call.1} parent=39 // pred_fallthru
          _
        %s271 = sand.u32 %s32, 1
        %s272 = scalar_lea.sflag [#allocation3], %s271
        %s273 = sand.u32 %s32, 1
        %s274 = smul.addr %s273, 16
        %s275 = scalar_lea.vmem [#allocation2], %s274
        %p276 = pneg %p45
        %p277 = pneg %p42
        %p278 = pneg %p66
        %p279 = pneg %p63
        %p280 = pneg %p87
        %p281 = pneg %p84
        %p282 = pneg %p108
        %p283 = pneg %p105
        %p284 = pneg %p129
        %p285 = pneg %p126
        %p286 = pneg %p155
        %p287 = pneg %p152
        %s288 = sand.u32 %s142, 1
        %s289 = scalar_lea.sflag [#allocation4], %s288
        %s290 = sand.u32 %s142, 1
        %s291 = smul.addr %s290, 16
        %s292 = scalar_lea.vmem [#allocation10], %s291
        %s293 = smul.u32 2, %s24
        %s294 = smul.u32 2, %s24
        %v295 = vld [vmem:[%s250] sm:$0xff]
        %v296 = vld [vmem:[%s250 + $0x8] sm:$0xff]
        %v297 = vld [vmem:[#allocation5] sm:$0xff]
        %v298 = vld [vmem:[#allocation5 + $0x8] sm:$0xff]
        %v299 = vld [vmem:[#allocation5 + $0x10] sm:$0xff]
        %v300 = vld [vmem:[#allocation5 + $0x18] sm:$0xff]
        %v301 = vld [vmem:[#allocation5 + $0x20] sm:$0xff]
        %v302 = vld [vmem:[#allocation5 + $0x28] sm:$0xff]
        %v303 = vld [vmem:[#allocation5 + $0x30] sm:$0xff]
        %v304 = vld [vmem:[#allocation5 + $0x38] sm:$0xff]
        %v305 = vld [vmem:[#allocation5 + $0x40] sm:$0xff]
        %v306 = vld [vmem:[#allocation5 + $0x48] sm:$0xff]
        %v307 = vld [vmem:[#allocation5 + $0x50] sm:$0xff]
        %v308 = vld [vmem:[#allocation5 + $0x58] sm:$0xff]
        %v309 = vld [vmem:[#allocation5 + $0x60] sm:$0xff]
        %v310 = vld [vmem:[#allocation5 + $0x68] sm:$0xff]
        %v311 = vld [vmem:[#allocation5 + $0x70] sm:$0xff]
        %v312 = vld [vmem:[#allocation5 + $0x78] sm:$0xff]
        %v313 = vld [vmem:[#allocation5 + $0x80] sm:$0xff]
        %v314 = vld [vmem:[#allocation5 + $0x88] sm:$0xff]
        %v315 = vld [vmem:[#allocation5 + $0x90] sm:$0xff]
        %v316 = vld [vmem:[#allocation5 + $0x98] sm:$0xff]
        %v317 = vld [vmem:[#allocation5 + $0xa0] sm:$0xff]
        %v318 = vld [vmem:[#allocation5 + $0xa8] sm:$0xff]
        %v319 = vld [vmem:[#allocation5 + $0xb0] sm:$0xff]
        %v320 = vld [vmem:[#allocation5 + $0xb8] sm:$0xff]
        %v321 = vld [vmem:[#allocation5 + $0xc0] sm:$0xff]
        %v322 = vld [vmem:[#allocation5 + $0xc8] sm:$0xff]
        %v323 = vld [vmem:[#allocation5 + $0xd0] sm:$0xff]
        %v324 = vld [vmem:[#allocation5 + $0xd8] sm:$0xff]
        %v325 = vld [vmem:[#allocation5 + $0xe0] sm:$0xff]
        %v326 = vld [vmem:[#allocation5 + $0xe8] sm:$0xff]
        %v327 = vld [vmem:[#allocation5 + $0xf0] sm:$0xff]
        %v328 = vld [vmem:[#allocation5 + $0xf8] sm:$0xff]
        %v329 = vld [vmem:[#allocation7] sm:$0x3]
        %v331 = vperm.slane %v329, 0
        %v332 = vperm.slane %v329, 1
        %335 = vmatpush.msra.mxu0 %v327
        %336 = vmatpush.msra.mxu0 %v325
        %337 = vmatpush.msra.mxu0 %v323
        %338 = vmatpush.msra.mxu0 %v321
        %339 = vmatpush.msra.mxu0 %v319
        %340 = vmatpush.msra.mxu0 %v317
        %341 = vmatpush.msra.mxu0 %v315
        %342 = vmatpush.msra.mxu0 %v313
        %343 = vmatpush.msra.mxu0 %v311
        %344 = vmatpush.msra.mxu0 %v309
        %345 = vmatpush.msra.mxu0 %v307
        %346 = vmatpush.msra.mxu0 %v305
        %347 = vmatpush.msra.mxu0 %v303
        %348 = vmatpush.msra.mxu0 %v301
        %349 = vmatpush.msra.mxu0 %v299
        %350 = vmatpush.msra.mxu0 %v297
        %351 = vmatmul.f32.gmra.mxu0 %v295
        %v352 = vpop.f32.mrf.mxu0
        %v353 = vadd.f32 %v331, %v352
        %354 = vmatmul.f32.gmra.mxu0 %v296
        %v355 = vpop.f32.mrf.mxu0
        %v356 = vadd.f32 %v331, %v355
        %357 = vdwg.mxu0
        %358 = vmatpush.msra.mxu0 %v328
        %359 = vmatpush.msra.mxu0 %v326
        %360 = vmatpush.msra.mxu0 %v324
        %361 = vmatpush.msra.mxu0 %v322
        %362 = vmatpush.msra.mxu0 %v320
        %363 = vmatpush.msra.mxu0 %v318
        %364 = vmatpush.msra.mxu0 %v316
        %365 = vmatpush.msra.mxu0 %v314
        %366 = vmatpush.msra.mxu0 %v312
        %367 = vmatpush.msra.mxu0 %v310
        %368 = vmatpush.msra.mxu0 %v308
        %369 = vmatpush.msra.mxu0 %v306
        %370 = vmatpush.msra.mxu0 %v304
        %371 = vmatpush.msra.mxu0 %v302
        %372 = vmatpush.msra.mxu0 %v300
        %373 = vmatpush.msra.mxu0 %v298
        %374 = vmatmul.f32.gmra.mxu0 %v295
        %v375 = vpop.f32.mrf.mxu0
        %v376 = vadd.f32 %v332, %v375
        %377 = vmatmul.f32.gmra.mxu0 %v296
        %v378 = vpop.f32.mrf.mxu0
        %v379 = vadd.f32 %v332, %v378
        %380 = vdwg.mxu0
        %v381 = vmul.f32 %v353, 0.5
        %v382 = vmul.f32 %v376, 0.5
        %v383 = vmul.f32 %v356, 0.5
        %v384 = vmul.f32 %v379, 0.5
        %v385 = vmul.f32 %v353, 0.70710677
        %v386 = vmul.f32 %v376, 0.70710677
        %v387 = vmul.f32 %v356, 0.70710677
        %v388 = vmul.f32 %v379, 0.70710677
        %v389 = vmul.f32 %v385, %v385
        %v390 = vmin.f32 16.0, %v389
        %v391 = vmul.f32 %v390, 2.1237322e-06
        %v392 = vadd.f32 %v391, 0.00028619796
        %v393 = vmul.f32 %v390, %v392
        %v394 = vadd.f32 %v393, 0.0036580483
        %v395 = vmul.f32 %v390, %v394
        %v396 = vadd.f32 %v395, 0.05243302
        %v397 = vmul.f32 %v390, %v396
        %v398 = vadd.f32 %v397, 0.18741608
        %v399 = vmul.f32 %v390, %v398
        %v400 = vadd.f32 %v399, 1.1283791
        %v401 = vmul.f32 %v385, %v400
        %v402 = vmul.f32 %v390, 3.8918573e-05
        %v403 = vadd.f32 %v402, 0.001143296
        %v404 = vmul.f32 %v390, %v403
        %v405 = vadd.f32 %v404, 0.014752088
        %v406 = vmul.f32 %v390, %v405
        %v407 = vadd.f32 %v406, 0.112945676
        %v408 = vmul.f32 %v390, %v407
        %v409 = vadd.f32 %v408, 0.4994258
        %v410 = vmul.f32 %v390, %v409
        %v411 = vadd.f32 %v410, 1.0
        %v412 = vrcp.pop %v411
        %v413 = vmul.f32 %v411, %v412
        %v414 = vsub.f32 1.0, %v413
        %v415 = vmul.f32 %v412, %v414
        %v416 = vadd.f32 %v412, %v415
        %vm417 = vweird.f32 %v411
        %vm418 = vweird.f32 %v412
        %vm419 = vmor %vm417, %vm418
        %v420 = vsel %vm419, %v412, %v416
        %v421 = vand.u32 2147483647, %v411
        %vm422 = vcmp.eq.f32.partialorder %v421, 8.507059e+37
        %v423 = vand.u32 %v411, 2147483648
        %v424 = vor.u32 1.1754944e-38, %v423
        %v425 = vsel %vm422, %v424, %v420
        %v426 = vmul.f32 %v401, %v425
        %v427 = vmin.f32 %v426, 1.0
        %v428 = vmax.f32 %v427, -1.0
        %v429 = vmul.f32 %v386, %v386
        %v430 = vmin.f32 16.0, %v429
        %v431 = vmul.f32 %v430, 2.1237322e-06
        %v432 = vadd.f32 %v431, 0.00028619796
        %v433 = vmul.f32 %v430, %v432
        %v434 = vadd.f32 %v433, 0.0036580483
        %v435 = vmul.f32 %v430, %v434
        %v436 = vadd.f32 %v435, 0.05243302
        %v437 = vmul.f32 %v430, %v436
        %v438 = vadd.f32 %v437, 0.18741608
        %v439 = vmul.f32 %v430, %v438
        %v440 = vadd.f32 %v439, 1.1283791
        %v441 = vmul.f32 %v386, %v440
        %v442 = vmul.f32 %v430, 3.8918573e-05
        %v443 = vadd.f32 %v442, 0.001143296
        %v444 = vmul.f32 %v430, %v443
        %v445 = vadd.f32 %v444, 0.014752088
        %v446 = vmul.f32 %v430, %v445
        %v447 = vadd.f32 %v446, 0.112945676
        %v448 = vmul.f32 %v430, %v447
        %v449 = vadd.f32 %v448, 0.4994258
        %v450 = vmul.f32 %v430, %v449
        %v451 = vadd.f32 %v450, 1.0
        %v452 = vrcp.pop %v451
        %v453 = vmul.f32 %v451, %v452
        %v454 = vsub.f32 1.0, %v453
        %v455 = vmul.f32 %v452, %v454
        %v456 = vadd.f32 %v452, %v455
        %vm457 = vweird.f32 %v451
        %vm458 = vweird.f32 %v452
        %vm459 = vmor %vm457, %vm458
        %v460 = vsel %vm459, %v452, %v456
        %v461 = vand.u32 2147483647, %v451
        %vm462 = vcmp.eq.f32.partialorder %v461, 8.507059e+37
        %v463 = vand.u32 %v451, 2147483648
        %v464 = vor.u32 1.1754944e-38, %v463
        %v465 = vsel %vm462, %v464, %v460
        %v466 = vmul.f32 %v441, %v465
        %v467 = vmin.f32 %v466, 1.0
        %v468 = vmax.f32 %v467, -1.0
        %v469 = vmul.f32 %v387, %v387
        %v470 = vmin.f32 16.0, %v469
        %v471 = vmul.f32 %v470, 2.1237322e-06
        %v472 = vadd.f32 %v471, 0.00028619796
        %v473 = vmul.f32 %v470, %v472
        %v474 = vadd.f32 %v473, 0.0036580483
        %v475 = vmul.f32 %v470, %v474
        %v476 = vadd.f32 %v475, 0.05243302
        %v477 = vmul.f32 %v470, %v476
        %v478 = vadd.f32 %v477, 0.18741608
        %v479 = vmul.f32 %v470, %v478
        %v480 = vadd.f32 %v479, 1.1283791
        %v481 = vmul.f32 %v387, %v480
        %v482 = vmul.f32 %v470, 3.8918573e-05
        %v483 = vadd.f32 %v482, 0.001143296
        %v484 = vmul.f32 %v470, %v483
        %v485 = vadd.f32 %v484, 0.014752088
        %v486 = vmul.f32 %v470, %v485
        %v487 = vadd.f32 %v486, 0.112945676
        %v488 = vmul.f32 %v470, %v487
        %v489 = vadd.f32 %v488, 0.4994258
        %v490 = vmul.f32 %v470, %v489
        %v491 = vadd.f32 %v490, 1.0
        %v492 = vrcp.pop %v491
        %v493 = vmul.f32 %v491, %v492
        %v494 = vsub.f32 1.0, %v493
        %v495 = vmul.f32 %v492, %v494
        %v496 = vadd.f32 %v492, %v495
        %vm497 = vweird.f32 %v491
        %vm498 = vweird.f32 %v492
        %vm499 = vmor %vm497, %vm498
        %v500 = vsel %vm499, %v492, %v496
        %v501 = vand.u32 2147483647, %v491
        %vm502 = vcmp.eq.f32.partialorder %v501, 8.507059e+37
        %v503 = vand.u32 %v491, 2147483648
        %v504 = vor.u32 1.1754944e-38, %v503
        %v505 = vsel %vm502, %v504, %v500
        %v506 = vmul.f32 %v481, %v505
        %v507 = vmin.f32 %v506, 1.0
        %v508 = vmax.f32 %v507, -1.0
        %v509 = vmul.f32 %v388, %v388
        %v510 = vmin.f32 16.0, %v509
        %v511 = vmul.f32 %v510, 2.1237322e-06
        %v512 = vadd.f32 %v511, 0.00028619796
        %v513 = vmul.f32 %v510, %v512
        %v514 = vadd.f32 %v513, 0.0036580483
        %v515 = vmul.f32 %v510, %v514
        %v516 = vadd.f32 %v515, 0.05243302
        %v517 = vmul.f32 %v510, %v516
        %v518 = vadd.f32 %v517, 0.18741608
        %v519 = vmul.f32 %v510, %v518
        %v520 = vadd.f32 %v519, 1.1283791
        %v521 = vmul.f32 %v388, %v520
        %v522 = vmul.f32 %v510, 3.8918573e-05
        %v523 = vadd.f32 %v522, 0.001143296
        %v524 = vmul.f32 %v510, %v523
        %v525 = vadd.f32 %v524, 0.014752088
        %v526 = vmul.f32 %v510, %v525
        %v527 = vadd.f32 %v526, 0.112945676
        %v528 = vmul.f32 %v510, %v527
        %v529 = vadd.f32 %v528, 0.4994258
        %v530 = vmul.f32 %v510, %v529
        %v531 = vadd.f32 %v530, 1.0
        %v532 = vrcp.pop %v531
        %v533 = vmul.f32 %v531, %v532
        %v534 = vsub.f32 1.0, %v533
        %v535 = vmul.f32 %v532, %v534
        %v536 = vadd.f32 %v532, %v535
        %vm537 = vweird.f32 %v531
        %vm538 = vweird.f32 %v532
        %vm539 = vmor %vm537, %vm538
        %v540 = vsel %vm539, %v532, %v536
        %v541 = vand.u32 2147483647, %v531
        %vm542 = vcmp.eq.f32.partialorder %v541, 8.507059e+37
        %v543 = vand.u32 %v531, 2147483648
        %v544 = vor.u32 1.1754944e-38, %v543
        %v545 = vsel %vm542, %v544, %v540
        %v546 = vmul.f32 %v521, %v545
        %v547 = vmin.f32 %v546, 1.0
        %v548 = vmax.f32 %v547, -1.0
        %v549 = vadd.f32 %v428, 1.0
        %v550 = vadd.f32 %v468, 1.0
        %v551 = vadd.f32 %v508, 1.0
        %v552 = vadd.f32 %v548, 1.0
        %v553 = vmul.f32 %v381, %v549
        %v554 = vmul.f32 %v382, %v550
        %v555 = vmul.f32 %v383, %v551
        %v556 = vmul.f32 %v384, %v552
        %v557 = vld [vmem:[#allocation8] sm:$0xff]
        %v558 = vld [vmem:[#allocation8 + $0x8] sm:$0xff]
        %v559 = vld [vmem:[#allocation8 + $0x10] sm:$0xff]
        %v560 = vld [vmem:[#allocation8 + $0x18] sm:$0xff]
        %v561 = vld [vmem:[#allocation8 + $0x20] sm:$0xff]
        %v562 = vld [vmem:[#allocation8 + $0x28] sm:$0xff]
        %v563 = vld [vmem:[#allocation8 + $0x30] sm:$0xff]
        %v564 = vld [vmem:[#allocation8 + $0x38] sm:$0xff]
        %v565 = vld [vmem:[#allocation8 + $0x40] sm:$0xff]
        %v566 = vld [vmem:[#allocation8 + $0x48] sm:$0xff]
        %v567 = vld [vmem:[#allocation8 + $0x50] sm:$0xff]
        %v568 = vld [vmem:[#allocation8 + $0x58] sm:$0xff]
        %v569 = vld [vmem:[#allocation8 + $0x60] sm:$0xff]
        %v570 = vld [vmem:[#allocation8 + $0x68] sm:$0xff]
        %v571 = vld [vmem:[#allocation8 + $0x70] sm:$0xff]
        %v572 = vld [vmem:[#allocation8 + $0x78] sm:$0xff]
        %v573 = vld [vmem:[#allocation8 + $0x80] sm:$0xff]
        %v574 = vld [vmem:[#allocation8 + $0x88] sm:$0xff]
        %v575 = vld [vmem:[#allocation8 + $0x90] sm:$0xff]
        %v576 = vld [vmem:[#allocation8 + $0x98] sm:$0xff]
        %v577 = vld [vmem:[#allocation8 + $0xa0] sm:$0xff]
        %v578 = vld [vmem:[#allocation8 + $0xa8] sm:$0xff]
        %v579 = vld [vmem:[#allocation8 + $0xb0] sm:$0xff]
        %v580 = vld [vmem:[#allocation8 + $0xb8] sm:$0xff]
        %v581 = vld [vmem:[#allocation8 + $0xc0] sm:$0xff]
        %v582 = vld [vmem:[#allocation8 + $0xc8] sm:$0xff]
        %v583 = vld [vmem:[#allocation8 + $0xd0] sm:$0xff]
        %v584 = vld [vmem:[#allocation8 + $0xd8] sm:$0xff]
        %v585 = vld [vmem:[#allocation8 + $0xe0] sm:$0xff]
        %v586 = vld [vmem:[#allocation8 + $0xe8] sm:$0xff]
        %v587 = vld [vmem:[#allocation8 + $0xf0] sm:$0xff]
        %v588 = vld [vmem:[#allocation8 + $0xf8] sm:$0xff]
        %v589 = vld [vmem:[%s4] sm:$0x1]
        %v591 = vperm.slane %v589, 0
        %593 = vmatpush.msra.mxu0 %v572
        %594 = vmatpush.msra.mxu0 %v571
        %595 = vmatpush.msra.mxu0 %v570
        %596 = vmatpush.msra.mxu0 %v569
        %597 = vmatpush.msra.mxu0 %v568
        %598 = vmatpush.msra.mxu0 %v567
        %599 = vmatpush.msra.mxu0 %v566
        %600 = vmatpush.msra.mxu0 %v565
        %601 = vmatpush.msra.mxu0 %v564
        %602 = vmatpush.msra.mxu0 %v563
        %603 = vmatpush.msra.mxu0 %v562
        %604 = vmatpush.msra.mxu0 %v561
        %605 = vmatpush.msra.mxu0 %v560
        %606 = vmatpush.msra.mxu0 %v559
        %607 = vmatpush.msra.mxu0 %v558
        %608 = vmatpush.msra.mxu0 %v557
        %609 = vmatmul.f32.gmra.mxu0 %v553
        %v610 = vpop.f32.mrf.mxu0
        %v611 = vadd.f32 %v591, %v610
        %612 = vmatmul.f32.gmra.mxu0 %v555
        %v613 = vpop.f32.mrf.mxu0
        %v614 = vadd.f32 %v591, %v613
        %615 = vdwg.mxu0
        %616 = vmatpush.msra.mxu0 %v588
        %617 = vmatpush.msra.mxu0 %v587
        %618 = vmatpush.msra.mxu0 %v586
        %619 = vmatpush.msra.mxu0 %v585
        %620 = vmatpush.msra.mxu0 %v584
        %621 = vmatpush.msra.mxu0 %v583
        %622 = vmatpush.msra.mxu0 %v582
        %623 = vmatpush.msra.mxu0 %v581
        %624 = vmatpush.msra.mxu0 %v580
        %625 = vmatpush.msra.mxu0 %v579
        %626 = vmatpush.msra.mxu0 %v578
        %627 = vmatpush.msra.mxu0 %v577
        %628 = vmatpush.msra.mxu0 %v576
        %629 = vmatpush.msra.mxu0 %v575
        %630 = vmatpush.msra.mxu0 %v574
        %631 = vmatpush.msra.mxu0 %v573
        %632 = vmatmul.f32.gmra.mxu0 %v554
        %v633 = vpop.f32.mrf.mxu0
        %v634 = vadd.f32 %v611, %v633
        %635 = vmatmul.f32.gmra.mxu0 %v556
        %v636 = vpop.f32.mrf.mxu0
        %v637 = vadd.f32 %v614, %v636
        %638 = vdwg.mxu0
        %639 = vst [vmem:[%s292] sm:$0xff] %v634
        %640 = vst [vmem:[%s292 + $0x8] sm:$0xff] %v637
        %s641 = sand.u32 %s142, 1
        %s642 = scalar_lea.sflag [#allocation4], %s641
        %s643 = sand.u32 %s142, 1
        %s644 = smul.addr %s643, 16
        %s645 = scalar_lea.vmem [#allocation10], %s644
        // Predicated region
        $region57: #{tpu_custom_call.1} parent=39 // pred_check
          %p646 = pneg %p152
        $region58: #{tpu_custom_call.1} parent=39 // pred_check_branch
          %648 = sbr.rel (%p646) target = $region60
        $region59: #{tpu_custom_call.1} parent=39 // pred_region
          %s649 = smul.u32 2, %s24
          %651 = vsyncadd %s642, 0
          %s652 = smul.addr %s649, 8
          %s653 = scalar_lea.hbm %s5, %s652
          %s654 = sshll.u32 %s645, 4
          %s655 = int_to_ptr.vmem [resolvable:$true] %s654
          %s656 = sshll.u32 %s653, 4
          %s657 = int_to_ptr.hbm [resolvable:$true] %s656
          %662 = dma.vmem_to_hbm [thread:$0]  %s655, 256, %s657, %s642, 128, 128, 8
        $region60: #{tpu_custom_call.1} parent=39 // pred_fallthru
          _
      $region40: #{tpu_custom_call.1} parent=5 // pred_fallthru
        _
      %p663 = scmp.le.s32.totalorder 2, %s19
      // Predicated region
      $region61: #{tpu_custom_call.1} parent=5 // pred_check
        %p664 = pneg %p663
      $region62: #{tpu_custom_call.1} parent=5 // pred_check_branch
        %666 = sbr.rel (%p664) target = $region64
      $region63: #{tpu_custom_call.1} parent=5 // pred_region
        %s667 = ssub.s32 %s19, 2
        // Predicated region
        $region65: #{tpu_custom_call.1} parent=63 // pred_check
          %p668 = pneg %p158
        $region66: #{tpu_custom_call.1} parent=63 // pred_check_branch
          %670 = sbr.rel (%p668) target = $region68
        $region67: #{tpu_custom_call.1} parent=63 // pred_region
          %s671 = sand.u32 %s143, 1
          %s672 = scalar_lea.sflag [#allocation4], %s671
          %s673 = sand.u32 %s143, 1
          %s674 = smul.addr %s673, 16
          %s675 = scalar_lea.vmem [#allocation10], %s674
          %677 = dma.done %s672, 256
        $region68: #{tpu_custom_call.1} parent=63 // pred_fallthru
          _
      $region64: #{tpu_custom_call.1} parent=5 // pred_fallthru
        _
    $region6: #{tpu_custom_call.1} parent=1 // loop_footer
      %s23 = sadd.s32 1, %s19
    $region7: #{tpu_custom_call.1} parent=1 // loop_footer_branch
      %18 = sbr.rel target = $region3
    $region8: #{tpu_custom_call.1} parent=1 // loop_exit
      _
    %678 = vsyncpa [#allocation3], 1
    %s679 = scalar_lea.sflag [#allocation3], 1
    %680 = vsyncpa %s679, 1
    %681 = vsyncpa [#allocation6], 1
    %682 = vsyncpa [#allocation9], 1
    %683 = vsyncpa [#allocation4], 1
    %s684 = scalar_lea.sflag [#allocation4], 1
    %685 = vsyncpa %s684, 1

</llo_original>
